<compile_context>
chip_gen: v6e
topology: v6e:2x2x1
jax: 0.10.0
libtpu: 0.0.40
codegen_flags: <defaults>
</compile_context>

<pallas_src>
import jax
import jax.numpy as jnp
from jax.experimental import pallas as pl
from jax.experimental.pallas import tpu as pltpu


def _rel_bias_kernel(grid_ref, wx_ref, wy_ref, sel_ref, out_ref):
    # grid_ref: (H*S, S)   f32 -- stacked per-head bias grids; row h*S + y, col x.
    # wx_ref:   (S,  DKp)  f32 -- precomputed x-axis bilinear hat weights.
    # wy_ref:   (H*S,DKp)  f32 -- precomputed y-axis hat weights, tiled per head.
    # sel_ref:  (H,  H*S)  f32 -- constant 0/1 per-head block selector.
    # out_ref:  (H,  DKp)  f32 -- bilinearly sampled bias, all heads at once.
    m = jnp.dot(grid_ref[...], wx_ref[...],
                preferred_element_type=jnp.float32)            # (H*S, DKp)
    out_ref[...] = jnp.dot(sel_ref[...], m * wy_ref[...],
                           preferred_element_type=jnp.float32)  # (H, DKp)


def init_relative_position_bias(relative_coords, num_heads, rel_pos_bias_size,
                                lane_multiple=128):
    """One-time precompute (mirrors __init__: relative_coords is a constant buffer).

    Builds the per-axis bilinear hat-weight matrices for
    grid_sample(..., align_corners=True, mode='bilinear', padding_mode='zeros')
    applied to rel_coords / (rel_coords.abs().max() + 1e-8), plus the per-head
    selector used to run the y-reduction on the MXU.
    """
    H = num_heads
    S = rel_pos_bias_size
    D, K, _ = relative_coords.shape
    DK = D * K
    DKp = ((DK + lane_multiple - 1) // lane_multiple) * lane_multiple

    coords = relative_coords.reshape(DK, 2).astype(jnp.float32)     # (DK, 2)
    # Scalar reciprocal folded into the affine unnormalization (one FMA per lane).
    inv = 1.0 / (jnp.max(jnp.abs(coords)) + 1e-8)
    half = 0.5 * (S - 1)
    gx = coords[:, 0] * (inv * half) + half                         # (DK,) in [0, S-1]
    gy = coords[:, 1] * (inv * half) + half                         # (DK,)

    # Hat-function bilinear weights: W[i, dk] = clamp(1 - |i - g[dk]|, 0, 1).
    # For g in [0, S-1] this is exactly the align_corners=True bilinear weight.
    sub = jnp.arange(S, dtype=jnp.float32)[:, None]                 # (S, 1)
    wx = jnp.clip(1.0 - jnp.abs(sub - gx[None, :]), 0.0, 1.0)       # (S, DK)
    wy = jnp.clip(1.0 - jnp.abs(sub - gy[None, :]), 0.0, 1.0)       # (S, DK)

    # Lane-pad DK -> DKp with zero weights (padded output columns become 0).
    pad = DKp - DK
    wx_p = jnp.pad(wx, ((0, 0), (0, pad)))                          # (S, DKp)
    wy_p = jnp.pad(wy, ((0, 0), (0, pad)))                          # (S, DKp)
    wy_big = jnp.tile(wy_p, (H, 1))                                 # (H*S, DKp)

    # Per-head 0/1 block selector: sel[h, h*S + i] = 1.
    rows = jnp.arange(H * S) // S
    sel = (rows[None, :] == jnp.arange(H)[:, None]).astype(jnp.float32)  # (H, H*S)

    return {
        "wx": wx_p, "wy_big": wy_big, "sel": sel,
        "H": H, "S": S, "D": D, "K": K, "DK": DK, "DKp": DKp,
        "relative_coords": relative_coords.astype(jnp.float32),
    }


def relative_position_bias_forward(consts, bias_grid, keys):
    """Mirror of RelativePositionBias.forward.

    consts:    output of init_relative_position_bias (constant precompute)
    bias_grid: (1, H, S, S) float32 (nn.Parameter, NCHW)
    keys:      (N, H, D, K, C_H)    (only shapes are used, as in PyTorch)

    Returns (rel_coords (1, D, K, 2), rel_bias (1, H, D, K)).
    """
    N, H, D, K, C_H = keys.shape
    assert D == consts["D"] and K == consts["K"] and H == consts["H"]
    S, DK, DKp = consts["S"], consts["DK"], consts["DKp"]
    assert bias_grid.shape == (1, H, S, S)

    # Stacked per-head grids: (H*S, S), row h*S + y, column x.
    grid_hs_s = bias_grid[0].astype(jnp.float32).reshape(H * S, S)

    vmem = pl.BlockSpec(memory_space=pltpu.MemorySpace.VMEM)
    rel_bias_padded = pl.pallas_call(
        _rel_bias_kernel,
        out_shape=jax.ShapeDtypeStruct((H, DKp), jnp.float32),
        in_specs=[vmem, vmem, vmem, vmem],
        out_specs=vmem,
    )(grid_hs_s, consts["wx"], consts["wy_big"], consts["sel"])

    rel_coords = consts["relative_coords"][None]                    # (1, D, K, 2)
    rel_bias = rel_bias_padded[:, :DK].reshape(1, H, D, K)          # (1, H, D, K)
    return rel_coords, rel_bias


def _reference_grid_sample(bias_grid, rel_coords):
    """Pure-JAX reference of the forward (explicit-corner bilinear sample)."""
    S = bias_grid.shape[-1]
    coords_n = rel_coords / (jnp.max(jnp.abs(rel_coords)) + 1e-8)   # (D, K, 2)
    x = (coords_n[:, :, 0] + 1.0) * 0.5 * (S - 1)
    y = (coords_n[:, :, 1] + 1.0) * 0.5 * (S - 1)
    x0 = jnp.floor(x).astype(jnp.int32)
    y0 = jnp.floor(y).astype(jnp.int32)
    x1 = x0 + 1
    y1 = y0 + 1
    wx = x - x0.astype(jnp.float32)
    wy = y - y0.astype(jnp.float32)

    def sample(yy, xx):
        valid = (xx >= 0) & (xx < S) & (yy >= 0) & (yy < S)
        xxc = jnp.clip(xx, 0, S - 1)
        yyc = jnp.clip(yy, 0, S - 1)
        v = bias_grid[0][:, yyc, xxc]                               # (H, D, K)
        return jnp.where(valid[None], v, 0.0)

    out = (sample(y0, x0) * ((1.0 - wy) * (1.0 - wx))[None]
           + sample(y0, x1) * ((1.0 - wy) * wx)[None]
           + sample(y1, x0) * (wy * (1.0 - wx))[None]
           + sample(y1, x1) * (wy * wx)[None])
    return out[None]                                                # (1, H, D, K)


if __name__ == "__main__":
    key = jax.random.PRNGKey(0)
    k_coords, k_grid, k_keys = jax.random.split(key, 3)

    # Small shapes consistent with the module:
    #   num_nodes D = 42, num_keys K = 8, num_heads H = 4,
    #   rel_pos_bias_size S = 16, init_variance = 10, batch N = 2, C_H = 32.
    N, H, D, K, C_H, S = 2, 4, 42, 8, 32, 16
    init_variance = 10.0

    # Synthetic stand-in for the icosphere-derived relative spherical coords
    # (degrees), deterministic.  TODO(synk): the real icosphere neighbor
    # geometry (IcoSphereRef / get_rotation_matrices) is host-side __init__
    # precompute outside the kernel's scope.
    relative_coords = jax.random.uniform(
        k_coords, (D, K, 2), minval=-45.0, maxval=45.0, dtype=jnp.float32)

    # nn.Parameter: init_variance * randn(1, H, S, S)
    bias_grid = init_variance * jax.random.normal(
        k_grid, (1, H, S, S), dtype=jnp.float32)

    # keys tensor (only its shape is consumed by forward)
    keys = jax.random.normal(k_keys, (N, H, D, K, C_H), dtype=jnp.float32)

    # One-time init precompute (constant: relative_coords is a registered buffer).
    consts = init_relative_position_bias(relative_coords, H, S)
    consts = jax.tree_util.tree_map(
        lambda x: jax.block_until_ready(x) if isinstance(x, jax.Array) else x,
        consts)

    rel_coords_out, rel_bias = relative_position_bias_forward(
        consts, bias_grid, keys)
    jax.block_until_ready(rel_bias)

    assert rel_coords_out.shape == (1, D, K, 2)
    assert rel_bias.shape == (1, H, D, K)

    ref = _reference_grid_sample(bias_grid, relative_coords)
    jax.block_until_ready(ref)
    assert jnp.allclose(rel_bias, ref, rtol=1e-5, atol=1e-4), (
        float(jnp.max(jnp.abs(rel_bias - ref))))

    print("KERNEL_OK")
</pallas_src>

<mosaic_0001>
module attributes {stable_mosaic.version = 11 : i64} {
  func.func @_rel_bias_kernel(%arg0: memref<64x16xf32, #tpu.memory_space<vmem>>, %arg1: memref<16x384xf32, #tpu.memory_space<vmem>>, %arg2: memref<64x384xf32, #tpu.memory_space<vmem>>, %arg3: memref<4x64xf32, #tpu.memory_space<vmem>>, %arg4: memref<4x384xf32, #tpu.memory_space<vmem>>) attributes {dimension_semantics = [], scalar_prefetch = 0 : i64, scratch_operands = 0 : i64, tpu.core_type = #tpu.core_type<tc>} {
    %c0 = arith.constant 0 : index
    %c0_0 = arith.constant 0 : index
    %0 = vector.load %arg0[%c0, %c0_0] : memref<64x16xf32, #tpu.memory_space<vmem>>, vector<64x16xf32>
    %c0_1 = arith.constant 0 : index
    %c0_2 = arith.constant 0 : index
    %1 = vector.load %arg1[%c0_1, %c0_2] : memref<16x384xf32, #tpu.memory_space<vmem>>, vector<16x384xf32>
    %cst = arith.constant dense<0.000000e+00> : vector<64x384xf32>
    %2 = tpu.matmul %0, %1, %cst {dimension_numbers = #tpu.dot_dimension_numbers<[1], [0], [0], [1], [0, 0, 1, 1], [], []>} : vector<64x16xf32>, vector<16x384xf32>, vector<64x384xf32> -> vector<64x384xf32>
    %c0_3 = arith.constant 0 : index
    %c0_4 = arith.constant 0 : index
    %3 = vector.load %arg3[%c0_3, %c0_4] : memref<4x64xf32, #tpu.memory_space<vmem>>, vector<4x64xf32>
    %c0_5 = arith.constant 0 : index
    %c0_6 = arith.constant 0 : index
    %4 = vector.load %arg2[%c0_5, %c0_6] : memref<64x384xf32, #tpu.memory_space<vmem>>, vector<64x384xf32>
    %5 = arith.mulf %2, %4 : vector<64x384xf32>
    %cst_7 = arith.constant dense<0.000000e+00> : vector<4x384xf32>
    %6 = tpu.matmul %3, %5, %cst_7 {dimension_numbers = #tpu.dot_dimension_numbers<[1], [0], [0], [1], [0, 0, 1, 1], [], []>} : vector<4x64xf32>, vector<64x384xf32>, vector<4x384xf32> -> vector<4x384xf32>
    %c0_8 = arith.constant 0 : index
    %c0_9 = arith.constant 0 : index
    %7 = vector.load %arg4[%c0_8, %c0_9] : memref<4x384xf32, #tpu.memory_space<vmem>>, vector<4x384xf32>
    tpu.vector_store %arg4[%c0_8, %c0_9], %6 {strides = array<i32>} : memref<4x384xf32, #tpu.memory_space<vmem>>, vector<4x384xf32>,
    return
  }
}

</mosaic_0001>

<llo_original>
// kernel: tpu_custom_call.1
$region0: #{tpu_custom_call.1}
  #allocation0 [shape = 'u32[]', space=smem, size = 0x4, offset = 0x4, fixed_abs, tag = 'smem constant byte address 0x4 - core index']
  #allocation1 [shape = 'u32[144,128]{1,0:T(1,128)}', space=vmem, size = 0x12000, scoped, tag = 'internal scratch']
  %s0 = inlined_call_operand.vmem [shape: f32[64,16], index: 0, kind: input, shape index: {}]
  %s1 = inlined_call_operand.vmem [shape: f32[16,384], index: 1, kind: input, shape index: {}]
  %s2 = inlined_call_operand.hbm [shape: f32[64,384], index: 2, kind: input, shape index: {}]
  %s3 = inlined_call_operand.vmem [shape: f32[4,64], index: 3, kind: input, shape index: {}]
  %s4 = inlined_call_operand.hbm [shape: f32[4,384], index: 4, kind: output, shape index: {}]
  %s5 = sld [smem:[#allocation0]]
  $region30: #{tpu_custom_call.1} parent=0
    _
  %s7 = ssub.s32 1, %s5
  %s8 = scalar_select 0, %s7, %s5
  $region1: #{tpu_custom_call.1} parent=0
    #allocation2 [shape = 'u8[98304]{0}', space=vmem, size = 0x18000, scoped, tag = 'input window, operand 2, single buffered']
    #allocation3 [shape = 's32[1]{0}', space=sflag, size = 0x4, scoped, tag = 'scoped memory for tpu_custom_call.1']
    #allocation4 [shape = 's32[1]{0}', space=sflag, size = 0x4, scoped, tag = 'scoped memory for tpu_custom_call.1']
    #allocation5 [shape = 'u8[6144]{0}', space=vmem, size = 0x1800, scoped, tag = 'output window, operand 0, single buffered']
    %9 = vsyncpa [#allocation3], 0
    %10 = vsyncpa [#allocation4], 0
    // Predicated region
    $region2: #{tpu_custom_call.1} parent=1 // pred_check
      _
    $region3: #{tpu_custom_call.1} parent=1 // pred_check_branch
      %12 = sbr.rel (0) target = $region5
    $region4: #{tpu_custom_call.1} parent=1 // pred_region
      _
    $region5: #{tpu_custom_call.1} parent=1 // pred_fallthru
      _
    // Predicated region
    $region6: #{tpu_custom_call.1} parent=1 // pred_check
      _
    $region7: #{tpu_custom_call.1} parent=1 // pred_check_branch
      %14 = sbr.rel (0) target = $region9
    $region8: #{tpu_custom_call.1} parent=1 // pred_region
      _
    $region9: #{tpu_custom_call.1} parent=1 // pred_fallthru
      _
    // Predicated region
    $region10: #{tpu_custom_call.1} parent=1 // pred_check
      _
    $region11: #{tpu_custom_call.1} parent=1 // pred_check_branch
      %16 = sbr.rel (0) target = $region13
    $region12: #{tpu_custom_call.1} parent=1 // pred_region
      %s18 = ssub.s32 3072, 3072
      %19 = vsyncadd [#allocation3], %s18
      %s20 = sshll.u32 [#allocation2], 4
      %s21 = int_to_ptr.vmem [resolvable:$true] %s20
      %26 = dma.hbm_to_vmem [thread:$0]  %s2, 3072, %s21, [#allocation3], 384, 384, 24
    $region13: #{tpu_custom_call.1} parent=1 // pred_fallthru
      _
    // Predicated region
    $region14: #{tpu_custom_call.1} parent=1 // pred_check
      _
    $region15: #{tpu_custom_call.1} parent=1 // pred_check_branch
      %28 = sbr.rel (0) target = $region17
    $region16: #{tpu_custom_call.1} parent=1 // pred_region
      _
    $region17: #{tpu_custom_call.1} parent=1 // pred_fallthru
      _
    // Predicated region
    $region18: #{tpu_custom_call.1} parent=1 // pred_check
      _
    $region19: #{tpu_custom_call.1} parent=1 // pred_check_branch
      %30 = sbr.rel (0) target = $region21
    $region20: #{tpu_custom_call.1} parent=1 // pred_region
      %31 = dma.done [#allocation3], 3072
    $region21: #{tpu_custom_call.1} parent=1 // pred_fallthru
      _
    %v32 = vld [vmem:[%s0] sm:$0xff]
    %v33 = vld [vmem:[%s0 + $0x8] sm:$0xff]
    %v34 = vld [vmem:[%s0 + $0x10] sm:$0xff]
    %v35 = vld [vmem:[%s0 + $0x18] sm:$0xff]
    %v36 = vld [vmem:[%s0 + $0x20] sm:$0xff]
    %v37 = vld [vmem:[%s0 + $0x28] sm:$0xff]
    %v38 = vld [vmem:[%s0 + $0x30] sm:$0xff]
    %v39 = vld [vmem:[%s0 + $0x38] sm:$0xff]
    %v40 = vld [vmem:[%s1] sm:$0xff]
    %v41 = vld [vmem:[%s1 + $0x8] sm:$0xff]
    %v42 = vld [vmem:[%s1 + $0x10] sm:$0xff]
    %v43 = vld [vmem:[%s1 + $0x18] sm:$0xff]
    %v44 = vld [vmem:[%s1 + $0x20] sm:$0xff]
    %v45 = vld [vmem:[%s1 + $0x28] sm:$0xff]
    %vm46 = vcmask 130048
    %v48 = vsel %vm46, %v32, 0
    %v51 = vsel %vm46, %v33, 0
    %v54 = vsel %vm46, %v34, 0
    %v57 = vsel %vm46, %v35, 0
    %v60 = vsel %vm46, %v36, 0
    %v63 = vsel %vm46, %v37, 0
    %v66 = vsel %vm46, %v38, 0
    %v69 = vsel %vm46, %v39, 0
    %71 = vmatprep.subr.mxu0 0.0
    %72 = vmatpush1.msra.mxu0 0.0
    %73 = vmatprep.subr.mxu0 0.0
    %74 = vmatpush1.msra.mxu0 0.0
    %75 = vmatprep.subr.mxu0 0.0
    %76 = vmatpush1.msra.mxu0 0.0
    %77 = vmatprep.subr.mxu0 0.0
    %78 = vmatpush1.msra.mxu0 0.0
    %79 = vmatprep.subr.mxu0 0.0
    %80 = vmatpush1.msra.mxu0 0.0
    %81 = vmatprep.subr.mxu0 0.0
    %82 = vmatpush1.msra.mxu0 0.0
    %83 = vmatprep.subr.mxu0 0.0
    %84 = vmatpush1.msra.mxu0 0.0
    %85 = vmatprep.subr.mxu0 0.0
    %86 = vmatpush1.msra.mxu0 0.0
    %87 = vmatprep.subr.mxu0 0.0
    %88 = vmatpush1.msra.mxu0 0.0
    %89 = vmatprep.subr.mxu0 0.0
    %90 = vmatpush1.msra.mxu0 0.0
    %91 = vmatprep.subr.mxu0 0.0
    %92 = vmatpush1.msra.mxu0 0.0
    %93 = vmatprep.subr.mxu0 0.0
    %94 = vmatpush1.msra.mxu0 0.0
    %95 = vmatprep.subr.mxu0 0.0
    %96 = vmatpush1.msra.mxu0 0.0
    %97 = vmatprep.subr.mxu0 0.0
    %98 = vmatpush1.msra.mxu0 0.0
    %99 = vmatprep.subr.mxu0 %v44
    %100 = vmatpush1.msra.mxu0 %v43
    %101 = vmatprep.subr.mxu0 %v41
    %102 = vmatpush1.msra.mxu0 %v40
    %103 = vmatprep.subr.mxu0 0.0
    %104 = vmatpush2.msra.mxu0 0.0
    %105 = vmatprep.subr.mxu0 0.0
    %106 = vmatpush2.msra.mxu0 0.0
    %107 = vmatprep.subr.mxu0 0.0
    %108 = vmatpush2.msra.mxu0 0.0
    %109 = vmatprep.subr.mxu0 0.0
    %110 = vmatpush2.msra.mxu0 0.0
    %111 = vmatprep.subr.mxu0 0.0
    %112 = vmatpush2.msra.mxu0 0.0
    %113 = vmatprep.subr.mxu0 0.0
    %114 = vmatpush2.msra.mxu0 0.0
    %115 = vmatprep.subr.mxu0 0.0
    %116 = vmatpush2.msra.mxu0 0.0
    %117 = vmatprep.subr.mxu0 0.0
    %118 = vmatpush2.msra.mxu0 0.0
    %119 = vmatprep.subr.mxu0 0.0
    %120 = vmatpush2.msra.mxu0 0.0
    %121 = vmatprep.subr.mxu0 0.0
    %122 = vmatpush2.msra.mxu0 0.0
    %123 = vmatprep.subr.mxu0 0.0
    %124 = vmatpush2.msra.mxu0 0.0
    %125 = vmatprep.subr.mxu0 0.0
    %126 = vmatpush2.msra.mxu0 0.0
    %127 = vmatprep.subr.mxu0 0.0
    %128 = vmatpush2.msra.mxu0 0.0
    %129 = vmatprep.subr.mxu0 0.0
    %130 = vmatpush2.msra.mxu0 0.0
    %131 = vmatprep.subr.mxu0 0.0
    %132 = vmatpush2.msra.mxu0 0.0
    %133 = vmatprep.subr.mxu0 0.0
    %134 = vmatpush2.msra.mxu0 0.0
    %135 = vmatprep.mubr.f32.mxu0 0.0
    %136 = vmatmul.mubr.f32.gmra.mxu0 %v48
    %v137 = vpop.f32.mrf.mxu0
    %v138 = vadd.f32 0.0, %v137
    %v139 = vpop.f32.mrf.mxu0
    %v140 = vadd.f32 0.0, %v139
    %141 = vmatprep.mubr.f32.mxu0 0.0
    %142 = vmatmul.mubr.f32.gmra.mxu0 %v51
    %v143 = vpop.f32.mrf.mxu0
    %v144 = vadd.f32 0.0, %v143
    %v145 = vpop.f32.mrf.mxu0
    %v146 = vadd.f32 0.0, %v145
    %147 = vmatprep.mubr.f32.mxu0 0.0
    %148 = vmatmul.mubr.f32.gmra.mxu0 %v54
    %v149 = vpop.f32.mrf.mxu0
    %v150 = vadd.f32 0.0, %v149
    %v151 = vpop.f32.mrf.mxu0
    %v152 = vadd.f32 0.0, %v151
    %153 = vmatprep.mubr.f32.mxu0 0.0
    %154 = vmatmul.mubr.f32.gmra.mxu0 %v57
    %v155 = vpop.f32.mrf.mxu0
    %v156 = vadd.f32 0.0, %v155
    %v157 = vpop.f32.mrf.mxu0
    %v158 = vadd.f32 0.0, %v157
    %159 = vmatprep.mubr.f32.mxu0 0.0
    %160 = vmatmul.mubr.f32.gmra.mxu0 %v60
    %v161 = vpop.f32.mrf.mxu0
    %v162 = vadd.f32 0.0, %v161
    %v163 = vpop.f32.mrf.mxu0
    %v164 = vadd.f32 0.0, %v163
    %165 = vmatprep.mubr.f32.mxu0 0.0
    %166 = vmatmul.mubr.f32.gmra.mxu0 %v63
    %v167 = vpop.f32.mrf.mxu0
    %v168 = vadd.f32 0.0, %v167
    %v169 = vpop.f32.mrf.mxu0
    %v170 = vadd.f32 0.0, %v169
    %171 = vmatprep.mubr.f32.mxu0 0.0
    %172 = vmatmul.mubr.f32.gmra.mxu0 %v66
    %v173 = vpop.f32.mrf.mxu0
    %v174 = vadd.f32 0.0, %v173
    %v175 = vpop.f32.mrf.mxu0
    %v176 = vadd.f32 0.0, %v175
    %177 = vmatprep.mubr.f32.mxu0 0.0
    %178 = vmatmul.mubr.f32.gmra.mxu0 %v69
    %v179 = vpop.f32.mrf.mxu0
    %v180 = vadd.f32 0.0, %v179
    %v181 = vpop.f32.mrf.mxu0
    %v182 = vadd.f32 0.0, %v181
    %183 = vdwg.mxu0
    %184 = vmatprep.subr.mxu0 0.0
    %185 = vmatpush1.msra.mxu0 0.0
    %186 = vmatprep.subr.mxu0 0.0
    %187 = vmatpush1.msra.mxu0 0.0
    %188 = vmatprep.subr.mxu0 0.0
    %189 = vmatpush1.msra.mxu0 0.0
    %190 = vmatprep.subr.mxu0 0.0
    %191 = vmatpush1.msra.mxu0 0.0
    %192 = vmatprep.subr.mxu0 0.0
    %193 = vmatpush1.msra.mxu0 0.0
    %194 = vmatprep.subr.mxu0 0.0
    %195 = vmatpush1.msra.mxu0 0.0
    %196 = vmatprep.subr.mxu0 0.0
    %197 = vmatpush1.msra.mxu0 0.0
    %198 = vmatprep.subr.mxu0 0.0
    %199 = vmatpush1.msra.mxu0 0.0
    %200 = vmatprep.subr.mxu0 0.0
    %201 = vmatpush1.msra.mxu0 0.0
    %202 = vmatprep.subr.mxu0 0.0
    %203 = vmatpush1.msra.mxu0 0.0
    %204 = vmatprep.subr.mxu0 0.0
    %205 = vmatpush1.msra.mxu0 0.0
    %206 = vmatprep.subr.mxu0 0.0
    %207 = vmatpush1.msra.mxu0 0.0
    %208 = vmatprep.subr.mxu0 0.0
    %209 = vmatpush1.msra.mxu0 0.0
    %210 = vmatprep.subr.mxu0 0.0
    %211 = vmatpush1.msra.mxu0 0.0
    %212 = vmatprep.subr.mxu0 0.0
    %213 = vmatpush1.msra.mxu0 %v45
    %214 = vmatprep.subr.mxu0 0.0
    %215 = vmatpush1.msra.mxu0 %v42
    %216 = vmatprep.subr.mxu0 0.0
    %217 = vmatpush2.msra.mxu0 0.0
    %218 = vmatprep.subr.mxu0 0.0
    %219 = vmatpush2.msra.mxu0 0.0
    %220 = vmatprep.subr.mxu0 0.0
    %221 = vmatpush2.msra.mxu0 0.0
    %222 = vmatprep.subr.mxu0 0.0
    %223 = vmatpush2.msra.mxu0 0.0
    %224 = vmatprep.subr.mxu0 0.0
    %225 = vmatpush2.msra.mxu0 0.0
    %226 = vmatprep.subr.mxu0 0.0
    %227 = vmatpush2.msra.mxu0 0.0
    %228 = vmatprep.subr.mxu0 0.0
    %229 = vmatpush2.msra.mxu0 0.0
    %230 = vmatprep.subr.mxu0 0.0
    %231 = vmatpush2.msra.mxu0 0.0
    %232 = vmatprep.subr.mxu0 0.0
    %233 = vmatpush2.msra.mxu0 0.0
    %234 = vmatprep.subr.mxu0 0.0
    %235 = vmatpush2.msra.mxu0 0.0
    %236 = vmatprep.subr.mxu0 0.0
    %237 = vmatpush2.msra.mxu0 0.0
    %238 = vmatprep.subr.mxu0 0.0
    %239 = vmatpush2.msra.mxu0 0.0
    %240 = vmatprep.subr.mxu0 0.0
    %241 = vmatpush2.msra.mxu0 0.0
    %242 = vmatprep.subr.mxu0 0.0
    %243 = vmatpush2.msra.mxu0 0.0
    %244 = vmatprep.subr.mxu0 0.0
    %245 = vmatpush2.msra.mxu0 0.0
    %246 = vmatprep.subr.mxu0 0.0
    %247 = vmatpush2.msra.mxu0 0.0
    %248 = vmatprep.mubr.f32.mxu0 0.0
    %249 = vmatmul.mubr.f32.gmra.mxu0 %v48
    %v250 = vpop.f32.mrf.mxu0
    %v251 = vadd.f32 0.0, %v250
    %v252 = vpop.f32.mrf.mxu0
    %253 = vmatprep.mubr.f32.mxu0 0.0
    %254 = vmatmul.mubr.f32.gmra.mxu0 %v51
    %v255 = vpop.f32.mrf.mxu0
    %v256 = vadd.f32 0.0, %v255
    %v257 = vpop.f32.mrf.mxu0
    %258 = vmatprep.mubr.f32.mxu0 0.0
    %259 = vmatmul.mubr.f32.gmra.mxu0 %v54
    %v260 = vpop.f32.mrf.mxu0
    %v261 = vadd.f32 0.0, %v260
    %v262 = vpop.f32.mrf.mxu0
    %263 = vmatprep.mubr.f32.mxu0 0.0
    %264 = vmatmul.mubr.f32.gmra.mxu0 %v57
    %v265 = vpop.f32.mrf.mxu0
    %v266 = vadd.f32 0.0, %v265
    %v267 = vpop.f32.mrf.mxu0
    %268 = vmatprep.mubr.f32.mxu0 0.0
    %269 = vmatmul.mubr.f32.gmra.mxu0 %v60
    %v270 = vpop.f32.mrf.mxu0
    %v271 = vadd.f32 0.0, %v270
    %v272 = vpop.f32.mrf.mxu0
    %273 = vmatprep.mubr.f32.mxu0 0.0
    %274 = vmatmul.mubr.f32.gmra.mxu0 %v63
    %v275 = vpop.f32.mrf.mxu0
    %v276 = vadd.f32 0.0, %v275
    %v277 = vpop.f32.mrf.mxu0
    %278 = vmatprep.mubr.f32.mxu0 0.0
    %279 = vmatmul.mubr.f32.gmra.mxu0 %v66
    %v280 = vpop.f32.mrf.mxu0
    %v281 = vadd.f32 0.0, %v280
    %v282 = vpop.f32.mrf.mxu0
    %283 = vmatprep.mubr.f32.mxu0 0.0
    %284 = vmatmul.mubr.f32.gmra.mxu0 %v69
    %v285 = vpop.f32.mrf.mxu0
    %v286 = vadd.f32 0.0, %v285
    %v287 = vpop.f32.mrf.mxu0
    %288 = vdwg.mxu0
    %v289 = vld [vmem:[%s3] sm:$0xf]
    %v290 = vld [vmem:[#allocation2] sm:$0xff]
    %v291 = vld [vmem:[#allocation2 + $0x8] sm:$0xff]
    %v292 = vld [vmem:[#allocation2 + $0x10] sm:$0xff]
    %v293 = vld [vmem:[#allocation2 + $0x18] sm:$0xff]
    %v294 = vld [vmem:[#allocation2 + $0x20] sm:$0xff]
    %v295 = vld [vmem:[#allocation2 + $0x28] sm:$0xff]
    %v296 = vld [vmem:[#allocation2 + $0x30] sm:$0xff]
    %v297 = vld [vmem:[#allocation2 + $0x38] sm:$0xff]
    %v298 = vld [vmem:[#allocation2 + $0x40] sm:$0xff]
    %v299 = vld [vmem:[#allocation2 + $0x48] sm:$0xff]
    %v300 = vld [vmem:[#allocation2 + $0x50] sm:$0xff]
    %v301 = vld [vmem:[#allocation2 + $0x58] sm:$0xff]
    %v302 = vld [vmem:[#allocation2 + $0x60] sm:$0xff]
    %v303 = vld [vmem:[#allocation2 + $0x68] sm:$0xff]
    %v304 = vld [vmem:[#allocation2 + $0x70] sm:$0xff]
    %v305 = vld [vmem:[#allocation2 + $0x78] sm:$0xff]
    %v306 = vld [vmem:[#allocation2 + $0x80] sm:$0xff]
    %v307 = vld [vmem:[#allocation2 + $0x88] sm:$0xff]
    %v308 = vld [vmem:[#allocation2 + $0x90] sm:$0xff]
    %v309 = vld [vmem:[#allocation2 + $0x98] sm:$0xff]
    %v310 = vld [vmem:[#allocation2 + $0xa0] sm:$0xff]
    %v311 = vld [vmem:[#allocation2 + $0xa8] sm:$0xff]
    %v312 = vld [vmem:[#allocation2 + $0xb0] sm:$0xff]
    %v313 = vld [vmem:[#allocation2 + $0xb8] sm:$0xff]
    %v314 = vmul.f32 %v138, %v290
    %v315 = vmul.f32 %v140, %v291
    %v316 = vmul.f32 %v251, %v292
    %v317 = vmul.f32 %v144, %v293
    %v318 = vmul.f32 %v146, %v294
    %v319 = vmul.f32 %v256, %v295
    %v320 = vmul.f32 %v150, %v296
    %v321 = vmul.f32 %v152, %v297
    %v322 = vmul.f32 %v261, %v298
    %v323 = vmul.f32 %v156, %v299
    %v324 = vmul.f32 %v158, %v300
    %v325 = vmul.f32 %v266, %v301
    %v326 = vmul.f32 %v162, %v302
    %v327 = vmul.f32 %v164, %v303
    %v328 = vmul.f32 %v271, %v304
    %v329 = vmul.f32 %v168, %v305
    %v330 = vmul.f32 %v170, %v306
    %v331 = vmul.f32 %v276, %v307
    %v332 = vmul.f32 %v174, %v308
    %v333 = vmul.f32 %v176, %v309
    %v334 = vmul.f32 %v281, %v310
    %v335 = vmul.f32 %v180, %v311
    %v336 = vmul.f32 %v182, %v312
    %v337 = vmul.f32 %v286, %v313
    %vm338 = vcmask 523264
    %v340 = vsel %vm338, %v289, 0
    %342 = vmatprep.subr.mxu0 0.0
    %343 = vmatpush1.msra.mxu0 0.0
    %344 = vmatprep.subr.mxu0 0.0
    %345 = vmatpush1.msra.mxu0 0.0
    %346 = vmatprep.subr.mxu0 0.0
    %347 = vmatpush1.msra.mxu0 0.0
    %348 = vmatprep.subr.mxu0 0.0
    %349 = vmatpush1.msra.mxu0 0.0
    %350 = vmatprep.subr.mxu0 0.0
    %351 = vmatpush1.msra.mxu0 0.0
    %352 = vmatprep.subr.mxu0 0.0
    %353 = vmatpush1.msra.mxu0 0.0
    %354 = vmatprep.subr.mxu0 0.0
    %355 = vmatpush1.msra.mxu0 0.0
    %356 = vmatprep.subr.mxu0 0.0
    %357 = vmatpush1.msra.mxu0 0.0
    %358 = vmatprep.subr.mxu0 %v336
    %359 = vmatpush1.msra.mxu0 %v335
    %360 = vmatprep.subr.mxu0 %v333
    %361 = vmatpush1.msra.mxu0 %v332
    %362 = vmatprep.subr.mxu0 %v330
    %363 = vmatpush1.msra.mxu0 %v329
    %364 = vmatprep.subr.mxu0 %v327
    %365 = vmatpush1.msra.mxu0 %v326
    %366 = vmatprep.subr.mxu0 %v324
    %367 = vmatpush1.msra.mxu0 %v323
    %368 = vmatprep.subr.mxu0 %v321
    %369 = vmatpush1.msra.mxu0 %v320
    %370 = vmatprep.subr.mxu0 %v318
    %371 = vmatpush1.msra.mxu0 %v317
    %372 = vmatprep.subr.mxu0 %v315
    %373 = vmatpush1.msra.mxu0 %v314
    %374 = vmatprep.subr.mxu0 0.0
    %375 = vmatpush2.msra.mxu0 0.0
    %376 = vmatprep.subr.mxu0 0.0
    %377 = vmatpush2.msra.mxu0 0.0
    %378 = vmatprep.subr.mxu0 0.0
    %379 = vmatpush2.msra.mxu0 0.0
    %380 = vmatprep.subr.mxu0 0.0
    %381 = vmatpush2.msra.mxu0 0.0
    %382 = vmatprep.subr.mxu0 0.0
    %383 = vmatpush2.msra.mxu0 0.0
    %384 = vmatprep.subr.mxu0 0.0
    %385 = vmatpush2.msra.mxu0 0.0
    %386 = vmatprep.subr.mxu0 0.0
    %387 = vmatpush2.msra.mxu0 0.0
    %388 = vmatprep.subr.mxu0 0.0
    %389 = vmatpush2.msra.mxu0 0.0
    %390 = vmatprep.subr.mxu0 0.0
    %391 = vmatpush2.msra.mxu0 0.0
    %392 = vmatprep.subr.mxu0 0.0
    %393 = vmatpush2.msra.mxu0 0.0
    %394 = vmatprep.subr.mxu0 0.0
    %395 = vmatpush2.msra.mxu0 0.0
    %396 = vmatprep.subr.mxu0 0.0
    %397 = vmatpush2.msra.mxu0 0.0
    %398 = vmatprep.subr.mxu0 0.0
    %399 = vmatpush2.msra.mxu0 0.0
    %400 = vmatprep.subr.mxu0 0.0
    %401 = vmatpush2.msra.mxu0 0.0
    %402 = vmatprep.subr.mxu0 0.0
    %403 = vmatpush2.msra.mxu0 0.0
    %404 = vmatprep.subr.mxu0 0.0
    %405 = vmatpush2.msra.mxu0 0.0
    %406 = vmatprep.mubr.f32.mxu0 0.0
    %407 = vmatmul.mubr.f32.gmra.mxu0 %v340
    %v408 = vpop.f32.mrf.mxu0
    %v409 = vadd.f32 0.0, %v408
    %v410 = vpop.f32.mrf.mxu0
    %v411 = vadd.f32 0.0, %v410
    %412 = vdwg.mxu0
    %413 = vmatprep.subr.mxu0 0.0
    %414 = vmatpush1.msra.mxu0 0.0
    %415 = vmatprep.subr.mxu0 0.0
    %416 = vmatpush1.msra.mxu0 0.0
    %417 = vmatprep.subr.mxu0 0.0
    %418 = vmatpush1.msra.mxu0 0.0
    %419 = vmatprep.subr.mxu0 0.0
    %420 = vmatpush1.msra.mxu0 0.0
    %421 = vmatprep.subr.mxu0 0.0
    %422 = vmatpush1.msra.mxu0 0.0
    %423 = vmatprep.subr.mxu0 0.0
    %424 = vmatpush1.msra.mxu0 0.0
    %425 = vmatprep.subr.mxu0 0.0
    %426 = vmatpush1.msra.mxu0 0.0
    %427 = vmatprep.subr.mxu0 0.0
    %428 = vmatpush1.msra.mxu0 0.0
    %429 = vmatprep.subr.mxu0 0.0
    %430 = vmatpush1.msra.mxu0 %v337
    %431 = vmatprep.subr.mxu0 0.0
    %432 = vmatpush1.msra.mxu0 %v334
    %433 = vmatprep.subr.mxu0 0.0
    %434 = vmatpush1.msra.mxu0 %v331
    %435 = vmatprep.subr.mxu0 0.0
    %436 = vmatpush1.msra.mxu0 %v328
    %437 = vmatprep.subr.mxu0 0.0
    %438 = vmatpush1.msra.mxu0 %v325
    %439 = vmatprep.subr.mxu0 0.0
    %440 = vmatpush1.msra.mxu0 %v322
    %441 = vmatprep.subr.mxu0 0.0
    %442 = vmatpush1.msra.mxu0 %v319
    %443 = vmatprep.subr.mxu0 0.0
    %444 = vmatpush1.msra.mxu0 %v316
    %445 = vmatprep.subr.mxu0 0.0
    %446 = vmatpush2.msra.mxu0 0.0
    %447 = vmatprep.subr.mxu0 0.0
    %448 = vmatpush2.msra.mxu0 0.0
    %449 = vmatprep.subr.mxu0 0.0
    %450 = vmatpush2.msra.mxu0 0.0
    %451 = vmatprep.subr.mxu0 0.0
    %452 = vmatpush2.msra.mxu0 0.0
    %453 = vmatprep.subr.mxu0 0.0
    %454 = vmatpush2.msra.mxu0 0.0
    %455 = vmatprep.subr.mxu0 0.0
    %456 = vmatpush2.msra.mxu0 0.0
    %457 = vmatprep.subr.mxu0 0.0
    %458 = vmatpush2.msra.mxu0 0.0
    %459 = vmatprep.subr.mxu0 0.0
    %460 = vmatpush2.msra.mxu0 0.0
    %461 = vmatprep.subr.mxu0 0.0
    %462 = vmatpush2.msra.mxu0 0.0
    %463 = vmatprep.subr.mxu0 0.0
    %464 = vmatpush2.msra.mxu0 0.0
    %465 = vmatprep.subr.mxu0 0.0
    %466 = vmatpush2.msra.mxu0 0.0
    %467 = vmatprep.subr.mxu0 0.0
    %468 = vmatpush2.msra.mxu0 0.0
    %469 = vmatprep.subr.mxu0 0.0
    %470 = vmatpush2.msra.mxu0 0.0
    %471 = vmatprep.subr.mxu0 0.0
    %472 = vmatpush2.msra.mxu0 0.0
    %473 = vmatprep.subr.mxu0 0.0
    %474 = vmatpush2.msra.mxu0 0.0
    %475 = vmatprep.subr.mxu0 0.0
    %476 = vmatpush2.msra.mxu0 0.0
    %477 = vmatprep.mubr.f32.mxu0 0.0
    %478 = vmatmul.mubr.f32.gmra.mxu0 %v340
    %v479 = vpop.f32.mrf.mxu0
    %v480 = vadd.f32 0.0, %v479
    %v481 = vpop.f32.mrf.mxu0
    %482 = vdwg.mxu0
    %v485 = vcombine.low %v409, %v411
    %487 = vst [vmem:[#allocation5] sm:$0xff] %v485
    %488 = vst [vmem:[#allocation5 + $0x8] sm:$0xf] %v480
    // Predicated region
    $region22: #{tpu_custom_call.1} parent=1 // pred_check
      _
    $region23: #{tpu_custom_call.1} parent=1 // pred_check_branch
      %490 = sbr.rel (0) target = $region25
    $region24: #{tpu_custom_call.1} parent=1 // pred_region
      %s492 = ssub.s32 192, 192
      %493 = vsyncadd [#allocation4], %s492
      %s495 = sshll.u32 [#allocation5], 4
      %s496 = int_to_ptr.vmem [resolvable:$true] %s495
      %498 = dma.vmem_to_hbm [thread:$0]  %s496, 192, %s4, [#allocation4]
    $region25: #{tpu_custom_call.1} parent=1 // pred_fallthru
      _
    // Predicated region
    $region26: #{tpu_custom_call.1} parent=1 // pred_check
      _
    $region27: #{tpu_custom_call.1} parent=1 // pred_check_branch
      %500 = sbr.rel (0) target = $region29
    $region28: #{tpu_custom_call.1} parent=1 // pred_region
      %501 = dma.done [#allocation4], 192
    $region29: #{tpu_custom_call.1} parent=1 // pred_fallthru
      _
    %502 = vsyncpa [#allocation3], 1
    %503 = vsyncpa [#allocation4], 1

</llo_original>
